<compile_context>
chip_gen: v5e
topology: v5e:2x2
jax: 0.10.0
libtpu: 0.0.40
codegen_flags: <defaults>
</compile_context>

<pallas_src>
import random
from functools import lru_cache

import jax
import jax.numpy as jnp
from jax.experimental import pallas as pl
from jax.experimental.pallas import tpu as pltpu


_VMEM_LIMIT_BYTES = 32 * 1024 * 1024   # explicit scoped-VMEM budget (fits v5e/v6e/v7x)
_MAX_TILE_BYTES = 4 * 1024 * 1024      # per-input tile cap (x2 inputs x2 buffers < limit)
_MAX_TILE_LANES = 128 * 128            # bounds the unrolled per-tile chunk loop


def _pick_tile_d(d, rows, itemsize):
    """Largest feature-axis tile that divides d, is a multiple of 128, fits the budget."""
    cap = max(128, min(_MAX_TILE_BYTES // max(1, rows * itemsize), _MAX_TILE_LANES))
    if d <= cap:
        return d
    if d % 128 != 0:
        # TODO(synk): non-128-aligned feature sizes fall back to a single block.
        return d
    best = 128
    t = 256
    while t <= cap:
        if d % t == 0:
            best = t
        t += 128
    return best


def _pick_rows(n_elems):
    """Fold a flat reduction into >=8 sublane rows when possible (vreg occupancy)."""
    for r in (8, 4, 2, 1):
        if n_elems % r == 0:
            return r
    return 1


# ---------------------------------------------------------------------------
# Kernel 1: per-row sum and sum-of-squares of an (R, D) slab.
# ---------------------------------------------------------------------------
def _row_stats_kernel(x_ref, sum_ref, sq_ref):
    @pl.when(pl.program_id(0) == 0)
    def _init():
        sum_ref[...] = jnp.zeros_like(sum_ref)
        sq_ref[...] = jnp.zeros_like(sq_ref)

    lanes = sum_ref.shape[1]
    n_chunks = x_ref.shape[1] // lanes
    s = sum_ref[...]
    q = sq_ref[...]
    for j in range(n_chunks):  # static unroll; pure VPU, cast happens in VMEM
        c = x_ref[:, pl.ds(j * lanes, lanes)].astype(jnp.float32)
        s = s + c
        q = q + c * c
    sum_ref[...] = s
    sq_ref[...] = q


@lru_cache(maxsize=None)
def _build_row_stats(r, d, itemsize):
    tile = _pick_tile_d(d, r, itemsize)
    lanes = 128 if tile % 128 == 0 else tile
    call = pl.pallas_call(
        _row_stats_kernel,
        out_shape=(jax.ShapeDtypeStruct((r, lanes), jnp.float32),
                   jax.ShapeDtypeStruct((r, lanes), jnp.float32)),
        grid=(d // tile,),
        in_specs=[pl.BlockSpec((r, tile), lambda k: (0, k))],
        out_specs=(pl.BlockSpec((r, lanes), lambda k: (0, 0)),
                   pl.BlockSpec((r, lanes), lambda k: (0, 0))),
        compiler_params=pltpu.CompilerParams(
            dimension_semantics=("arbitrary",),
            vmem_limit_bytes=_VMEM_LIMIT_BYTES),
    )
    return jax.jit(call)


def _row_stats(x2d):
    """x2d: (R, D). Returns (row_sum, row_sumsq), each (R,) float32."""
    r, d = x2d.shape
    sums, sqs = _build_row_stats(r, d, x2d.dtype.itemsize)(x2d)
    return jnp.sum(sums, axis=1), jnp.sum(sqs, axis=1)


# ---------------------------------------------------------------------------
# Kernel 2: sum((x - y)^2) over an (R, D) slab -> lane-dense partials.
# ---------------------------------------------------------------------------
def _sq_diff_sum_kernel(x_ref, y_ref, acc_ref):
    @pl.when(pl.program_id(0) == 0)
    def _init():
        acc_ref[...] = jnp.zeros_like(acc_ref)

    lanes = acc_ref.shape[1]
    n_chunks = x_ref.shape[1] // lanes
    acc = acc_ref[...]
    for j in range(n_chunks):
        cx = x_ref[:, pl.ds(j * lanes, lanes)].astype(jnp.float32)
        cy = y_ref[:, pl.ds(j * lanes, lanes)].astype(jnp.float32)
        dxy = cx - cy
        acc = acc + dxy * dxy
    acc_ref[...] = acc


@lru_cache(maxsize=None)
def _build_sq_diff_sum(r, d, itemsize):
    tile = _pick_tile_d(d, r, itemsize)
    lanes = 128 if tile % 128 == 0 else tile
    call = pl.pallas_call(
        _sq_diff_sum_kernel,
        out_shape=jax.ShapeDtypeStruct((r, lanes), jnp.float32),
        grid=(d // tile,),
        in_specs=[pl.BlockSpec((r, tile), lambda k: (0, k)),
                  pl.BlockSpec((r, tile), lambda k: (0, k))],
        out_specs=pl.BlockSpec((r, lanes), lambda k: (0, 0)),
        compiler_params=pltpu.CompilerParams(
            dimension_semantics=("arbitrary",),
            vmem_limit_bytes=_VMEM_LIMIT_BYTES),
    )
    return jax.jit(call)


def _mse(a, b):
    """Mean squared error between same-shaped arrays; reduction runs in Pallas."""
    assert a.shape == b.shape
    n_elems = a.size
    r = _pick_rows(n_elems)
    d = n_elems // r
    a2 = a.reshape(r, d)
    b2 = b.reshape(r, d)
    part = _build_sq_diff_sum(r, d, a2.dtype.itemsize)(a2, b2)
    return jnp.sum(part) / n_elems


# ---------------------------------------------------------------------------
# KDloss pieces.
# ---------------------------------------------------------------------------
def _adaptive_avg_pool_nchw(x, out_size):
    """F.adaptive_avg_pool2d(x, (out_size, out_size)) for integer ratios."""
    n, c, h, w = x.shape
    if h == out_size and w == out_size:
        return x
    # TODO(synk): only the integer-ratio case (the UNet feature pyramid) is
    # implemented; fractional adaptive bins are left in XLA-land unimplemented.
    assert h % out_size == 0 and w % out_size == 0, (h, w, out_size)
    kh, kw = h // out_size, w // out_size
    x = x.reshape(n, c, out_size, kh, out_size, kw)
    return x.mean(axis=(3, 5))


def _intra_fd(f):
    n, c, h, w = f.shape
    row_sum, row_sq = _row_stats(f.reshape(n * c, h * w))
    row_sum = row_sum.reshape(n, c)
    row_sq = row_sq.reshape(n, c)
    denom = jnp.maximum(jnp.sqrt(row_sq), 1e-12)              # F.normalize(p=2, dim=(2,3))
    score = jnp.sum(row_sum / denom, axis=0) / (n * h * w)    # .mean([0, 2, 3])
    order = jnp.argsort(-score)                               # descending channel sort
    top = jnp.take(f, order[: c // 2], axis=1)
    bot = jnp.take(f, order[c // 2:], axis=1)
    return _mse(top, bot)


def _inter_fd(f_s, f_t, rng):
    s_c, t_c = f_s.shape[1], f_t.shape[1]
    s_h, t_h = f_s.shape[2], f_t.shape[2]
    if s_h > t_h:
        f_s = _adaptive_avg_pool_nchw(f_s, t_h)
    elif s_h < t_h:
        f_t = _adaptive_avg_pool_nchw(f_t, s_h)
    m = min(s_c, t_c)
    # TODO(synk): like the torch module, channel sampling uses host-side
    # random.sample; under jit the sampled indices are baked per trace.
    idx_s = rng.sample(range(s_c), m)
    idx_t = rng.sample(range(t_c), m)
    a = jnp.take(f_s, jnp.asarray(idx_s, dtype=jnp.int32), axis=1)
    b = jnp.take(f_t, jnp.asarray(idx_t, dtype=jnp.int32), axis=1)
    return _mse(a, b)   # f_t.detach() only affects gradients, not the forward value


def kd_loss(feature, feature_decoder, final_up, lambda_x, seed=0):
    """Forward pass of KDloss(lambda_x)(feature, feature_decoder, final_up)."""
    rng = random.Random(seed)
    f1, f2, f3, f4 = feature
    f1d, f2d, f3d = feature_decoder
    loss = (_intra_fd(f1) + _intra_fd(f2) + _intra_fd(f3) + _intra_fd(f4)) / 4.0
    loss = loss + (_intra_fd(f1d) + _intra_fd(f2d) + _intra_fd(f3d)) / 3.0
    loss = loss + (_inter_fd(f1d, final_up, rng) + _inter_fd(f2d, final_up, rng)
                   + _inter_fd(f3d, final_up, rng) + _inter_fd(f1, final_up, rng)
                   + _inter_fd(f2, final_up, rng) + _inter_fd(f3, final_up, rng)
                   + _inter_fd(f4, final_up, rng)) / 7.0
    return loss * lambda_x


# ---------------------------------------------------------------------------
# Pure-JAX reference (mirrors the torch ops; same host RNG stream).
# ---------------------------------------------------------------------------
def _kd_loss_ref(feature, feature_decoder, final_up, lambda_x, seed=0):
    rng = random.Random(seed)

    def intra(f):
        c = f.shape[1]
        nrm = jnp.sqrt(jnp.sum(jnp.square(f.astype(jnp.float32)),
                               axis=(2, 3), keepdims=True))
        fn = f / jnp.maximum(nrm, 1e-12)
        score = jnp.mean(fn, axis=(0, 2, 3))
        order = jnp.argsort(-score)
        fs = jnp.take(f, order, axis=1)
        return jnp.mean(jnp.square(fs[:, : c // 2] - fs[:, c // 2:]))

    def inter(fs, ft):
        s_c, t_c = fs.shape[1], ft.shape[1]
        s_h, t_h = fs.shape[2], ft.shape[2]
        if s_h > t_h:
            fs = _adaptive_avg_pool_nchw(fs, t_h)
        elif s_h < t_h:
            ft = _adaptive_avg_pool_nchw(ft, s_h)
        m = min(s_c, t_c)
        i_s = jnp.asarray(rng.sample(range(s_c), m), dtype=jnp.int32)
        i_t = jnp.asarray(rng.sample(range(t_c), m), dtype=jnp.int32)
        return jnp.mean(jnp.square(jnp.take(fs, i_s, axis=1) - jnp.take(ft, i_t, axis=1)))

    f1, f2, f3, f4 = feature
    f1d, f2d, f3d = feature_decoder
    loss = (intra(f1) + intra(f2) + intra(f3) + intra(f4)) / 4.0
    loss = loss + (intra(f1d) + intra(f2d) + intra(f3d)) / 3.0
    loss = loss + (inter(f1d, final_up) + inter(f2d, final_up) + inter(f3d, final_up)
                   + inter(f1, final_up) + inter(f2, final_up) + inter(f3, final_up)
                   + inter(f4, final_up)) / 7.0
    return loss * lambda_x


if __name__ == "__main__":
    key = jax.random.PRNGKey(0)
    keys = jax.random.split(key, 10)

    n = 2
    feature = [
        jax.random.normal(keys[0], (n, 8, 32, 32), dtype=jnp.float32),
        jax.random.normal(keys[1], (n, 16, 16, 16), dtype=jnp.float32),
        jax.random.normal(keys[2], (n, 32, 8, 8), dtype=jnp.float32),
        jax.random.normal(keys[3], (n, 64, 4, 4), dtype=jnp.float32),
    ]
    feature_decoder = [
        jax.random.normal(keys[4], (n, 8, 32, 32), dtype=jnp.float32),
        jax.random.normal(keys[5], (n, 16, 16, 16), dtype=jnp.float32),
        jax.random.normal(keys[6], (n, 32, 8, 8), dtype=jnp.float32),
    ]
    final_up = jax.random.normal(keys[7], (n, 4, 32, 32), dtype=jnp.float32)
    lambda_x = 0.5

    loss = kd_loss(feature, feature_decoder, final_up, lambda_x, seed=0)
    loss = jax.block_until_ready(loss)

    ref = _kd_loss_ref(feature, feature_decoder, final_up, lambda_x, seed=0)
    assert jnp.allclose(loss, ref, rtol=1e-4, atol=1e-5), (loss, ref)

    # Extra self-check: exercise a multi-step reduction grid (accumulator revisits).
    xb = jax.random.normal(keys[8], (16, 32768), dtype=jnp.float32)
    yb = jax.random.normal(keys[9], (16, 32768), dtype=jnp.float32)
    s_k, q_k = _row_stats(xb)
    assert jnp.allclose(s_k, jnp.sum(xb, axis=1), rtol=1e-4, atol=0.1)
    assert jnp.allclose(q_k, jnp.sum(xb * xb, axis=1), rtol=1e-4, atol=0.1)
    mse_k = _mse(xb, yb)
    assert jnp.allclose(mse_k, jnp.mean(jnp.square(xb - yb)), rtol=1e-4, atol=1e-5)

    print("KERNEL_OK")
</pallas_src>

<mosaic_0001>
module attributes {stable_mosaic.version = 11 : i64} {
  func.func @_row_stats_kernel(%arg0: i32, %arg1: memref<16x1024xf32, #tpu.memory_space<vmem>>, %arg2: memref<16x128xf32, #tpu.memory_space<vmem>>, %arg3: memref<16x128xf32, #tpu.memory_space<vmem>>) attributes {dimension_semantics = [#tpu.dimension_semantics<arbitrary>], iteration_bounds = array<i64: 1>, scalar_prefetch = 0 : i64, scratch_operands = 0 : i64, tpu.core_type = #tpu.core_type<tc>, window_params = [{transform_indices = @transform_0, window_bounds = array<i64: 16, 1024>}, {pipeline_mode = #tpu.pipeline_mode<synchronous>, transform_indices = @transform_1, window_bounds = array<i64: 16, 128>}, {pipeline_mode = #tpu.pipeline_mode<synchronous>, transform_indices = @transform_2, window_bounds = array<i64: 16, 128>}]} {
    %c0_i32 = arith.constant 0 : i32
    %0 = arith.cmpi eq, %arg0, %c0_i32 : i32
    %1 = arith.extui %0 : i1 to i32
    %c0_i32_0 = arith.constant 0 : i32
    %2 = arith.cmpi ne, %1, %c0_i32_0 : i32
    scf.if %2 {
      %cst = arith.constant 0.000000e+00 : f32
      %39 = vector.broadcast %cst : f32 to vector<16x128xf32>
      %c0_17 = arith.constant 0 : index
      %c0_18 = arith.constant 0 : index
      %40 = vector.load %arg2[%c0_17, %c0_18] : memref<16x128xf32, #tpu.memory_space<vmem>>, vector<16x128xf32>
      tpu.vector_store %arg2[%c0_17, %c0_18], %39 {strides = array<i32>} : memref<16x128xf32, #tpu.memory_space<vmem>>, vector<16x128xf32>,
      %cst_19 = arith.constant 0.000000e+00 : f32
      %41 = vector.broadcast %cst_19 : f32 to vector<16x128xf32>
      %c0_20 = arith.constant 0 : index
      %c0_21 = arith.constant 0 : index
      %42 = vector.load %arg3[%c0_20, %c0_21] : memref<16x128xf32, #tpu.memory_space<vmem>>, vector<16x128xf32>
      tpu.vector_store %arg3[%c0_20, %c0_21], %41 {strides = array<i32>} : memref<16x128xf32, #tpu.memory_space<vmem>>, vector<16x128xf32>,
    } else {
    }
    %c0 = arith.constant 0 : index
    %c0_1 = arith.constant 0 : index
    %3 = vector.load %arg2[%c0, %c0_1] : memref<16x128xf32, #tpu.memory_space<vmem>>, vector<16x128xf32>
    %c0_2 = arith.constant 0 : index
    %c0_3 = arith.constant 0 : index
    %4 = vector.load %arg3[%c0_2, %c0_3] : memref<16x128xf32, #tpu.memory_space<vmem>>, vector<16x128xf32>
    %c0_4 = arith.constant 0 : index
    %c0_5 = arith.constant 0 : index
    %5 = vector.load %arg1[%c0_4, %c0_5] : memref<16x1024xf32, #tpu.memory_space<vmem>>, vector<16x128xf32>
    %6 = arith.addf %3, %5 : vector<16x128xf32>
    %7 = arith.mulf %5, %5 : vector<16x128xf32>
    %8 = arith.addf %4, %7 : vector<16x128xf32>
    %c0_6 = arith.constant 0 : index
    %c128 = arith.constant 128 : index
    %9 = vector.load %arg1[%c0_6, %c128] : memref<16x1024xf32, #tpu.memory_space<vmem>>, vector<16x128xf32>
    %10 = arith.addf %6, %9 : vector<16x128xf32>
    %11 = arith.mulf %9, %9 : vector<16x128xf32>
    %12 = arith.addf %8, %11 : vector<16x128xf32>
    %c0_7 = arith.constant 0 : index
    %c256 = arith.constant 256 : index
    %13 = vector.load %arg1[%c0_7, %c256] : memref<16x1024xf32, #tpu.memory_space<vmem>>, vector<16x128xf32>
    %14 = arith.addf %10, %13 : vector<16x128xf32>
    %15 = arith.mulf %13, %13 : vector<16x128xf32>
    %16 = arith.addf %12, %15 : vector<16x128xf32>
    %c0_8 = arith.constant 0 : index
    %c384 = arith.constant 384 : index
    %17 = vector.load %arg1[%c0_8, %c384] : memref<16x1024xf32, #tpu.memory_space<vmem>>, vector<16x128xf32>
    %18 = arith.addf %14, %17 : vector<16x128xf32>
    %19 = arith.mulf %17, %17 : vector<16x128xf32>
    %20 = arith.addf %16, %19 : vector<16x128xf32>
    %c0_9 = arith.constant 0 : index
    %c512 = arith.constant 512 : index
    %21 = vector.load %arg1[%c0_9, %c512] : memref<16x1024xf32, #tpu.memory_space<vmem>>, vector<16x128xf32>
    %22 = arith.addf %18, %21 : vector<16x128xf32>
    %23 = arith.mulf %21, %21 : vector<16x128xf32>
    %24 = arith.addf %20, %23 : vector<16x128xf32>
    %c0_10 = arith.constant 0 : index
    %c640 = arith.constant 640 : index
    %25 = vector.load %arg1[%c0_10, %c640] : memref<16x1024xf32, #tpu.memory_space<vmem>>, vector<16x128xf32>
    %26 = arith.addf %22, %25 : vector<16x128xf32>
    %27 = arith.mulf %25, %25 : vector<16x128xf32>
    %28 = arith.addf %24, %27 : vector<16x128xf32>
    %c0_11 = arith.constant 0 : index
    %c768 = arith.constant 768 : index
    %29 = vector.load %arg1[%c0_11, %c768] : memref<16x1024xf32, #tpu.memory_space<vmem>>, vector<16x128xf32>
    %30 = arith.addf %26, %29 : vector<16x128xf32>
    %31 = arith.mulf %29, %29 : vector<16x128xf32>
    %32 = arith.addf %28, %31 : vector<16x128xf32>
    %c0_12 = arith.constant 0 : index
    %c896 = arith.constant 896 : index
    %33 = vector.load %arg1[%c0_12, %c896] : memref<16x1024xf32, #tpu.memory_space<vmem>>, vector<16x128xf32>
    %34 = arith.addf %30, %33 : vector<16x128xf32>
    %35 = arith.mulf %33, %33 : vector<16x128xf32>
    %36 = arith.addf %32, %35 : vector<16x128xf32>
    %c0_13 = arith.constant 0 : index
    %c0_14 = arith.constant 0 : index
    %37 = vector.load %arg2[%c0_13, %c0_14] : memref<16x128xf32, #tpu.memory_space<vmem>>, vector<16x128xf32>
    tpu.vector_store %arg2[%c0_13, %c0_14], %34 {strides = array<i32>} : memref<16x128xf32, #tpu.memory_space<vmem>>, vector<16x128xf32>,
    %c0_15 = arith.constant 0 : index
    %c0_16 = arith.constant 0 : index
    %38 = vector.load %arg3[%c0_15, %c0_16] : memref<16x128xf32, #tpu.memory_space<vmem>>, vector<16x128xf32>
    tpu.vector_store %arg3[%c0_15, %c0_16], %36 {strides = array<i32>} : memref<16x128xf32, #tpu.memory_space<vmem>>, vector<16x128xf32>,
    return
  }
  func.func @transform_0(%arg0: i32) -> (i32, i32) {
    %c0_i32 = arith.constant 0 : i32
    %c0_i32_0 = arith.constant 0 : i32
    return %c0_i32, %arg0 : i32, i32
  }
  func.func @transform_1(%arg0: i32) -> (i32, i32) {
    %c0_i32 = arith.constant 0 : i32
    %c0_i32_0 = arith.constant 0 : i32
    %c0_i32_1 = arith.constant 0 : i32
    return %c0_i32, %c0_i32_0 : i32, i32
  }
  func.func @transform_2(%arg0: i32) -> (i32, i32) {
    %c0_i32 = arith.constant 0 : i32
    %c0_i32_0 = arith.constant 0 : i32
    %c0_i32_1 = arith.constant 0 : i32
    return %c0_i32, %c0_i32_0 : i32, i32
  }
}

</mosaic_0001>

<llo_original>
// kernel: tpu_custom_call.1
$region0: #{tpu_custom_call.1}
  #allocation0 [shape = 'u32[]', space=smem, size = 0x4, offset = 0x4, fixed_abs, tag = 'smem constant byte address 0x4 - core index']
  #allocation1 [shape = 'u32[72,128]{1,0:T(1,128)}', space=vmem, size = 0x9000, scoped, tag = 'internal scratch']
  %s0 = inlined_call_operand.hbm [shape: f32[16,1024], index: 0, kind: input, shape index: {}]
  %s1 = inlined_call_operand.hbm [shape: f32[16,128], index: 1, kind: output, shape index: {0}]
  %s2 = inlined_call_operand.hbm [shape: f32[16,128], index: 2, kind: output, shape index: {1}]
  %3 = xla_tuple %s1, %s2
  %s4 = sld [smem:[#allocation0]]
  $region30: #{tpu_custom_call.1} parent=0
    _
  %s6 = ssub.s32 1, %s4
  %s7 = scalar_select 0, %s6, %s4
  $region1: #{tpu_custom_call.1} parent=0
    #allocation2 [shape = 'u8[65536]{0}', space=vmem, size = 0x10000, scoped, tag = 'input window, operand 0, single buffered']
    #allocation3 [shape = 's32[1]{0}', space=sflag, size = 0x4, scoped, tag = 'scoped memory for tpu_custom_call.1']
    #allocation4 [shape = 's32[1]{0}', space=sflag, size = 0x4, scoped, tag = 'scoped memory for tpu_custom_call.1']
    #allocation5 [shape = 'u8[8192]{0}', space=vmem, size = 0x2000, scoped, tag = 'output window, operand 0, single buffered']
    #allocation6 [shape = 'u8[8192]{0}', space=vmem, size = 0x2000, scoped, tag = 'output window, operand 1, single buffered']
    #allocation7 [shape = 's32[1]{0}', space=sflag, size = 0x4, scoped, tag = 'scoped memory for tpu_custom_call.1']
    %8 = vsyncpa [#allocation3], 0
    %9 = vsyncpa [#allocation4], 0
    %10 = vsyncpa [#allocation7], 0
    // Predicated region
    $region2: #{tpu_custom_call.1} parent=1 // pred_check
      _
    $region3: #{tpu_custom_call.1} parent=1 // pred_check_branch
      %12 = sbr.rel (0) target = $region5
    $region4: #{tpu_custom_call.1} parent=1 // pred_region
      %14 = vsyncadd [#allocation3], 0
      %s15 = sshll.u32 %s0, 4
      %s16 = int_to_ptr.hbm [resolvable:$true] %s15
      %s17 = sshll.u32 [#allocation2], 4
      %s18 = int_to_ptr.vmem [resolvable:$true] %s17
      %23 = dma.hbm_to_vmem [thread:$0]  %s16, 2048, %s18, [#allocation3], 1024, 1024, 64
    $region5: #{tpu_custom_call.1} parent=1 // pred_fallthru
      _
    // Predicated region
    $region6: #{tpu_custom_call.1} parent=1 // pred_check
      _
    $region7: #{tpu_custom_call.1} parent=1 // pred_check_branch
      %25 = sbr.rel (0) target = $region9
    $region8: #{tpu_custom_call.1} parent=1 // pred_region
      %27 = dma.done [#allocation3], 2048
    $region9: #{tpu_custom_call.1} parent=1 // pred_fallthru
      _
    %p28 = scmp.eq.s32.totalorder 0, 0
    // Predicated region
    $region10: #{tpu_custom_call.1} parent=1 // pred_check
      %p29 = pneg %p28
    $region11: #{tpu_custom_call.1} parent=1 // pred_check_branch
      %31 = sbr.rel (%p29) target = $region13
    $region12: #{tpu_custom_call.1} parent=1 // pred_region
      %32 = vst [vmem:[#allocation5] sm:$0xff] 0.0
      %33 = vst [vmem:[#allocation5 + $0x8] sm:$0xff] 0.0
      %34 = vst [vmem:[#allocation6] sm:$0xff] 0.0
      %35 = vst [vmem:[#allocation6 + $0x8] sm:$0xff] 0.0
    $region13: #{tpu_custom_call.1} parent=1 // pred_fallthru
      _
    %v36 = vld [vmem:[#allocation5] sm:$0xff]
    %v37 = vld [vmem:[#allocation5 + $0x8] sm:$0xff]
    %v38 = vld [vmem:[#allocation6] sm:$0xff]
    %v39 = vld [vmem:[#allocation6 + $0x8] sm:$0xff]
    %v40 = vld [vmem:[#allocation2] sm:$0xff]
    %v41 = vld [vmem:[#allocation2 + $0x40] sm:$0xff]
    %v42 = vadd.f32 %v36, %v40
    %v43 = vadd.f32 %v37, %v41
    %v44 = vmul.f32 %v40, %v40
    %v45 = vmul.f32 %v41, %v41
    %v46 = vadd.f32 %v38, %v44
    %v47 = vadd.f32 %v39, %v45
    %v48 = vld [vmem:[#allocation2 + $0x8] sm:$0xff]
    %v49 = vld [vmem:[#allocation2 + $0x48] sm:$0xff]
    %v50 = vadd.f32 %v42, %v48
    %v51 = vadd.f32 %v43, %v49
    %v52 = vmul.f32 %v48, %v48
    %v53 = vmul.f32 %v49, %v49
    %v54 = vadd.f32 %v46, %v52
    %v55 = vadd.f32 %v47, %v53
    %v56 = vld [vmem:[#allocation2 + $0x10] sm:$0xff]
    %v57 = vld [vmem:[#allocation2 + $0x50] sm:$0xff]
    %v58 = vadd.f32 %v50, %v56
    %v59 = vadd.f32 %v51, %v57
    %v60 = vmul.f32 %v56, %v56
    %v61 = vmul.f32 %v57, %v57
    %v62 = vadd.f32 %v54, %v60
    %v63 = vadd.f32 %v55, %v61
    %v64 = vld [vmem:[#allocation2 + $0x18] sm:$0xff]
    %v65 = vld [vmem:[#allocation2 + $0x58] sm:$0xff]
    %v66 = vadd.f32 %v58, %v64
    %v67 = vadd.f32 %v59, %v65
    %v68 = vmul.f32 %v64, %v64
    %v69 = vmul.f32 %v65, %v65
    %v70 = vadd.f32 %v62, %v68
    %v71 = vadd.f32 %v63, %v69
    %v72 = vld [vmem:[#allocation2 + $0x20] sm:$0xff]
    %v73 = vld [vmem:[#allocation2 + $0x60] sm:$0xff]
    %v74 = vadd.f32 %v66, %v72
    %v75 = vadd.f32 %v67, %v73
    %v76 = vmul.f32 %v72, %v72
    %v77 = vmul.f32 %v73, %v73
    %v78 = vadd.f32 %v70, %v76
    %v79 = vadd.f32 %v71, %v77
    %v80 = vld [vmem:[#allocation2 + $0x28] sm:$0xff]
    %v81 = vld [vmem:[#allocation2 + $0x68] sm:$0xff]
    %v82 = vadd.f32 %v74, %v80
    %v83 = vadd.f32 %v75, %v81
    %v84 = vmul.f32 %v80, %v80
    %v85 = vmul.f32 %v81, %v81
    %v86 = vadd.f32 %v78, %v84
    %v87 = vadd.f32 %v79, %v85
    %v88 = vld [vmem:[#allocation2 + $0x30] sm:$0xff]
    %v89 = vld [vmem:[#allocation2 + $0x70] sm:$0xff]
    %v90 = vadd.f32 %v82, %v88
    %v91 = vadd.f32 %v83, %v89
    %v92 = vmul.f32 %v88, %v88
    %v93 = vmul.f32 %v89, %v89
    %v94 = vadd.f32 %v86, %v92
    %v95 = vadd.f32 %v87, %v93
    %v96 = vld [vmem:[#allocation2 + $0x38] sm:$0xff]
    %v97 = vld [vmem:[#allocation2 + $0x78] sm:$0xff]
    %v98 = vadd.f32 %v90, %v96
    %v99 = vadd.f32 %v91, %v97
    %v100 = vmul.f32 %v96, %v96
    %v101 = vmul.f32 %v97, %v97
    %v102 = vadd.f32 %v94, %v100
    %v103 = vadd.f32 %v95, %v101
    %104 = vst [vmem:[#allocation5] sm:$0xff] %v98
    %105 = vst [vmem:[#allocation5 + $0x8] sm:$0xff] %v99
    %106 = vst [vmem:[#allocation6] sm:$0xff] %v102
    %107 = vst [vmem:[#allocation6 + $0x8] sm:$0xff] %v103
    // Predicated region
    $region14: #{tpu_custom_call.1} parent=1 // pred_check
      _
    $region15: #{tpu_custom_call.1} parent=1 // pred_check_branch
      %109 = sbr.rel (0) target = $region17
    $region16: #{tpu_custom_call.1} parent=1 // pred_region
      %111 = vsyncadd [#allocation4], 0
      %s112 = sshll.u32 [#allocation5], 4
      %s113 = int_to_ptr.vmem [resolvable:$true] %s112
      %s114 = sshll.u32 %s1, 4
      %s115 = int_to_ptr.hbm [resolvable:$true] %s114
      %120 = dma.vmem_to_hbm [thread:$0]  %s113, 256, %s115, [#allocation4], 128, 128, 8
    $region17: #{tpu_custom_call.1} parent=1 // pred_fallthru
      _
    // Predicated region
    $region18: #{tpu_custom_call.1} parent=1 // pred_check
      _
    $region19: #{tpu_custom_call.1} parent=1 // pred_check_branch
      %122 = sbr.rel (0) target = $region21
    $region20: #{tpu_custom_call.1} parent=1 // pred_region
      %124 = vsyncadd [#allocation7], 0
      %s125 = sshll.u32 [#allocation6], 4
      %s126 = int_to_ptr.vmem [resolvable:$true] %s125
      %s127 = sshll.u32 %s2, 4
      %s128 = int_to_ptr.hbm [resolvable:$true] %s127
      %133 = dma.vmem_to_hbm [thread:$0]  %s126, 256, %s128, [#allocation7], 128, 128, 8
    $region21: #{tpu_custom_call.1} parent=1 // pred_fallthru
      _
    // Predicated region
    $region22: #{tpu_custom_call.1} parent=1 // pred_check
      _
    $region23: #{tpu_custom_call.1} parent=1 // pred_check_branch
      %135 = sbr.rel (0) target = $region25
    $region24: #{tpu_custom_call.1} parent=1 // pred_region
      %137 = dma.done [#allocation4], 256
    $region25: #{tpu_custom_call.1} parent=1 // pred_fallthru
      _
    // Predicated region
    $region26: #{tpu_custom_call.1} parent=1 // pred_check
      _
    $region27: #{tpu_custom_call.1} parent=1 // pred_check_branch
      %139 = sbr.rel (0) target = $region29
    $region28: #{tpu_custom_call.1} parent=1 // pred_region
      %141 = dma.done [#allocation7], 256
    $region29: #{tpu_custom_call.1} parent=1 // pred_fallthru
      _
    %142 = vsyncpa [#allocation3], 1
    %143 = vsyncpa [#allocation4], 1
    %144 = vsyncpa [#allocation7], 1

</llo_original>
